<compile_context>
chip_gen: v5e
topology: v5e:2x2
jax: 0.10.0
libtpu: 0.0.40
codegen_flags: <defaults>
</compile_context>

<pallas_src>
import jax
import jax.numpy as jnp
from jax.experimental import pallas as pl
from jax.experimental.pallas import tpu as pltpu

BT = 128          # batch tile size (batch lives on the lane axis)
LANES = 128       # lane width of the packed parameter slab
IDX_ROWS = 8      # index block rows: row 0 = loc idx, row 1 = tim idx, rest unused
N_CLS = 24        # number of duration classes / hours


def _round_up(n, m):
    return (n + m - 1) // m * m


def make_layout(loc_emb_dim, tim_emb_dim, point_size):
    """Static row offsets inside the packed (n_rows, LANES) parameter slab."""
    D = loc_emb_dim + tim_emb_dim
    assert N_CLS + point_size <= LANES and D + 1 <= LANES, "enlarge LANES for this config"
    lay = dict(D=D, loc_emb_dim=loc_emb_dim, tim_emb_dim=tim_emb_dim,
               point_size=point_size)
    r = 0
    # combined embedding table (D, 24+point_size):
    #   rows [0:tim_emb_dim), cols [0:24)              = emb_tim.T
    #   rows [tim_emb_dim:D), cols [24:24+point_size)  = emb_loc.T
    lay["r_emb"] = r; r += _round_up(D, 8)
    lay["r_ln"] = r;  r += _round_up(D, 8)      # col 0 = gamma, col 1 = beta  (as columns)
    lay["r_w1"] = r;  r += _round_up(15, 8)     # (15, D) w1 | col D  = b1
    lay["r_w2"] = r;  r += _round_up(5, 8)      # (5, 15) w2 | col 15 = b2
    lay["r_w3"] = r;  r += _round_up(N_CLS, 8)  # (24, 5) w3 | col 5  = b3
    lay["n_rows"] = _round_up(r, 8)
    return lay


def init_params(key, loc_emb_dim, tim_emb_dim, point_size):
    """Parameters in the natural (torch) convention: Linear weights are (out, in)."""
    ks = jax.random.split(key, 8)
    D = loc_emb_dim + tim_emb_dim
    return {
        "emb_loc": jax.random.normal(ks[0], (point_size, loc_emb_dim), jnp.float32),
        "emb_tim": jax.random.normal(ks[1], (N_CLS, tim_emb_dim), jnp.float32),
        "ln_gamma": jnp.ones((D,), jnp.float32),
        "ln_beta": jnp.zeros((D,), jnp.float32),
        "w1": 0.1 * jax.random.normal(ks[2], (15, D), jnp.float32),
        "b1": 0.01 * jax.random.normal(ks[3], (15,), jnp.float32),
        "w2": 0.1 * jax.random.normal(ks[4], (5, 15), jnp.float32),
        "b2": 0.01 * jax.random.normal(ks[5], (5,), jnp.float32),
        "w3": 0.1 * jax.random.normal(ks[6], (N_CLS, 5), jnp.float32),
        "b3": 0.01 * jax.random.normal(ks[7], (N_CLS,), jnp.float32),
    }


def pack_params(params, lay):
    """Build the single contiguous f32 parameter slab (done once, not per forward)."""
    D, td, ps = lay["D"], lay["tim_emb_dim"], lay["point_size"]
    slab = jnp.zeros((lay["n_rows"], LANES), jnp.float32)
    r = lay["r_emb"]
    slab = slab.at[r:r + td, 0:N_CLS].set(params["emb_tim"].T.astype(jnp.float32))
    slab = slab.at[r + td:r + D, N_CLS:N_CLS + ps].set(params["emb_loc"].T.astype(jnp.float32))
    r = lay["r_ln"]
    slab = slab.at[r:r + D, 0].set(params["ln_gamma"].astype(jnp.float32))
    slab = slab.at[r:r + D, 1].set(params["ln_beta"].astype(jnp.float32))
    r = lay["r_w1"]
    slab = slab.at[r:r + 15, 0:D].set(params["w1"].astype(jnp.float32))
    slab = slab.at[r:r + 15, D].set(params["b1"].astype(jnp.float32))
    r = lay["r_w2"]
    slab = slab.at[r:r + 5, 0:15].set(params["w2"].astype(jnp.float32))
    slab = slab.at[r:r + 5, 15].set(params["b2"].astype(jnp.float32))
    r = lay["r_w3"]
    slab = slab.at[r:r + N_CLS, 0:5].set(params["w3"].astype(jnp.float32))
    slab = slab.at[r:r + N_CLS, 5].set(params["b3"].astype(jnp.float32))
    return slab


def _make_kernel(lay):
    D, td, ps = lay["D"], lay["tim_emb_dim"], lay["point_size"]
    r_emb, r_ln = lay["r_emb"], lay["r_ln"]
    r_w1, r_w2, r_w3 = lay["r_w1"], lay["r_w2"], lay["r_w3"]

    def kernel(idx_ref, slab_ref, out_ref):
        # idx_ref: (IDX_ROWS, BT) int32; slab_ref: (n_rows, LANES) f32; out_ref: (24, BT) f32
        loc_idx = idx_ref[0:1, :]                       # (1, BT)
        tim_idx = idx_ref[1:2, :]                       # (1, BT)

        # Fused embedding lookup + concat([start_time, start_loc]):
        # one-hot MXU matmul against the packed block-diagonal table.
        emb_tbl = slab_ref[r_emb:r_emb + D, 0:N_CLS + ps]                 # (D, 24+ps)
        rows = jax.lax.broadcasted_iota(jnp.int32, (N_CLS + ps, BT), 0)
        onehot = ((rows == tim_idx) | (rows == loc_idx + N_CLS)).astype(jnp.float32)
        x = jnp.dot(emb_tbl, onehot, preferred_element_type=jnp.float32)  # (D, BT)

        # LayerNorm over features (sublane axis), eps=1e-6 as in nn.LayerNorm.
        mu = jnp.mean(x, axis=0, keepdims=True)
        xc = x - mu
        var = jnp.mean(xc * xc, axis=0, keepdims=True)
        xn = xc * jax.lax.rsqrt(var + 1e-6)
        gamma = slab_ref[r_ln:r_ln + D, 0:1]                              # (D, 1)
        beta = slab_ref[r_ln:r_ln + D, 1:2]                               # (D, 1)
        xn = xn * gamma + beta

        # predict: Linear(D,15) -> Dropout(0.8) [eval-mode identity] -> ReLU
        #          -> Linear(15,5) -> ReLU -> Linear(5,24)
        # TODO(synk): training-mode Dropout(p=0.8) (pltpu.prng_* mask + 1/(1-p) scale) not implemented.
        w1 = slab_ref[r_w1:r_w1 + 15, 0:D]
        b1 = slab_ref[r_w1:r_w1 + 15, D:D + 1]
        h1 = jnp.maximum(jnp.dot(w1, xn, preferred_element_type=jnp.float32) + b1, 0.0)
        w2 = slab_ref[r_w2:r_w2 + 5, 0:15]
        b2 = slab_ref[r_w2:r_w2 + 5, 15:16]
        h2 = jnp.maximum(jnp.dot(w2, h1, preferred_element_type=jnp.float32) + b2, 0.0)
        w3 = slab_ref[r_w3:r_w3 + N_CLS, 0:5]
        b3 = slab_ref[r_w3:r_w3 + N_CLS, 5:6]
        logits = jnp.dot(w3, h2, preferred_element_type=jnp.float32) + b3  # (24, BT)

        # log_softmax over the 24 classes (per sample / lane).
        m = jnp.max(logits, axis=0, keepdims=True)
        sh = logits - m
        lse = jnp.log(jnp.sum(jnp.exp(sh), axis=0, keepdims=True))
        out_ref[...] = sh - lse

    return kernel


def gen_duration_forward_batch(loc_idx, tim_idx, slab, lay):
    """loc_idx, tim_idx: int (B,) arrays. Returns (B, 24) log-probabilities."""
    loc_idx = jnp.asarray(loc_idx, jnp.int32).reshape(-1)
    tim_idx = jnp.asarray(tim_idx, jnp.int32).reshape(-1)
    B = loc_idx.shape[0]
    Bp = _round_up(max(B, 1), BT)
    idx = jnp.zeros((IDX_ROWS, Bp), jnp.int32)
    idx = idx.at[0, :B].set(loc_idx)
    idx = idx.at[1, :B].set(tim_idx)

    n_rows = lay["n_rows"]
    out = pl.pallas_call(
        _make_kernel(lay),
        out_shape=jax.ShapeDtypeStruct((N_CLS, Bp), jnp.float32),
        grid_spec=pltpu.PrefetchScalarGridSpec(
            num_scalar_prefetch=0,
            grid=(Bp // BT,),
            in_specs=[
                pl.BlockSpec((IDX_ROWS, BT), lambda i: (0, i)),     # per-tile indices
                pl.BlockSpec((n_rows, LANES), lambda i: (0, 0)),    # weights: VMEM-resident
            ],
            out_specs=pl.BlockSpec((N_CLS, BT), lambda i: (0, i)),  # lane-dense (24, 128) tile
        ),
        compiler_params=pltpu.CompilerParams(
            dimension_semantics=("parallel",)),                      # shard tiles across TCs (v7x)
    )(idx, slab)
    return out[:, :B].T                                              # (B, 24)


def gen_duration_forward(x, slab, lay):
    """Single-sample forward matching the PyTorch module: x = [loc_idx, hour]."""
    x = jnp.asarray(x, jnp.int32)
    return gen_duration_forward_batch(x[0:1], x[1:2], slab, lay)[0]  # (24,)


if __name__ == "__main__":
    loc_emb_dim = 16
    tim_emb_dim = 16
    point_size = 32

    lay = make_layout(loc_emb_dim, tim_emb_dim, point_size)
    key = jax.random.PRNGKey(0)
    pkey, lkey, tkey = jax.random.split(key, 3)
    params = init_params(pkey, loc_emb_dim, tim_emb_dim, point_size)
    slab = pack_params(params, lay)          # packed once, reused for every forward

    # Batched run: 256 samples -> 2 grid tiles of 128 lanes each.
    B = 256
    loc = jax.random.randint(lkey, (B,), 0, point_size, dtype=jnp.int32)
    tim = jax.random.randint(tkey, (B,), 0, N_CLS, dtype=jnp.int32)
    logp = gen_duration_forward_batch(loc, tim, slab, lay)
    jax.block_until_ready(logp)
    assert logp.shape == (B, N_CLS)
    assert float(jnp.max(jnp.abs(jnp.sum(jnp.exp(logp), axis=-1) - 1.0))) < 1e-4

    # Plain-JAX reference (VPU-only math) for a few samples.
    def ref_forward(l, t):
        point = jnp.concatenate([params["emb_tim"][t], params["emb_loc"][l]])
        mu = jnp.mean(point)
        var = jnp.mean((point - mu) ** 2)
        xn = (point - mu) * jax.lax.rsqrt(var + 1e-6) * params["ln_gamma"] + params["ln_beta"]
        h1 = jnp.maximum(jnp.sum(params["w1"] * xn[None, :], axis=1) + params["b1"], 0.0)
        h2 = jnp.maximum(jnp.sum(params["w2"] * h1[None, :], axis=1) + params["b2"], 0.0)
        logits = jnp.sum(params["w3"] * h2[None, :], axis=1) + params["b3"]
        return jax.nn.log_softmax(logits)

    ref = jax.vmap(ref_forward)(loc[:8], tim[:8])
    assert float(jnp.max(jnp.abs(ref - logp[:8]))) < 1e-2

    # Single-sample path (same semantics as gen_duration.forward(x)).
    x = jnp.array([int(loc[0]), 7], dtype=jnp.int32)
    dur = gen_duration_forward(x, slab, lay)
    jax.block_until_ready(dur)
    assert dur.shape == (N_CLS,)
    assert abs(float(jnp.sum(jnp.exp(dur))) - 1.0) < 1e-4
    print("KERNEL_OK")
</pallas_src>

<mosaic_0001>
module attributes {stable_mosaic.version = 11 : i64} {
  func.func @kernel(%arg0: i32, %arg1: memref<8x128xi32, #tpu.memory_space<vmem>>, %arg2: memref<112x128xf32, #tpu.memory_space<vmem>>, %arg3: memref<24x128xf32, #tpu.memory_space<vmem>>) attributes {dimension_semantics = [#tpu.dimension_semantics<parallel>], iteration_bounds = array<i64: 2>, scalar_prefetch = 0 : i64, scratch_operands = 0 : i64, tpu.core_type = #tpu.core_type<tc>, window_params = [{transform_indices = @transform_0, window_bounds = array<i64: 8, 128>}, {pipeline_mode = #tpu.pipeline_mode<synchronous>, transform_indices = @transform_1, window_bounds = array<i64: 112, 128>}, {transform_indices = @transform_2, window_bounds = array<i64: 24, 128>}]} {
    %c0 = arith.constant 0 : index
    %c0_0 = arith.constant 0 : index
    %0 = vector.load %arg1[%c0, %c0_0] : memref<8x128xi32, #tpu.memory_space<vmem>>, vector<1x128xi32>
    %c1 = arith.constant 1 : index
    %c0_1 = arith.constant 0 : index
    %1 = vector.load %arg1[%c1, %c0_1] : memref<8x128xi32, #tpu.memory_space<vmem>>, vector<1x128xi32>
    %c0_2 = arith.constant 0 : index
    %c0_3 = arith.constant 0 : index
    %2 = vector.load %arg2[%c0_2, %c0_3] : memref<112x128xf32, #tpu.memory_space<vmem>>, vector<32x56xf32>
    %3 = tpu.iota {dimensions = array<i32: 0>} : vector<56x128xi32>
    %4 = vector.broadcast %1 : vector<1x128xi32> to vector<56x128xi32>
    %5 = arith.cmpi eq, %3, %4 : vector<56x128xi32>
    %c24_i32 = arith.constant 24 : i32
    %6 = vector.broadcast %c24_i32 : i32 to vector<1x128xi32>
    %7 = arith.addi %0, %6 : vector<1x128xi32>
    %8 = vector.broadcast %7 : vector<1x128xi32> to vector<56x128xi32>
    %9 = arith.cmpi eq, %3, %8 : vector<56x128xi32>
    %10 = arith.ori %5, %9 : vector<56x128xi1>
    %11 = arith.extui %10 : vector<56x128xi1> to vector<56x128xi32>
    %12 = arith.sitofp %11 : vector<56x128xi32> to vector<56x128xf32>
    %cst = arith.constant dense<0.000000e+00> : vector<32x128xf32>
    %13 = tpu.matmul %2, %12, %cst {dimension_numbers = #tpu.dot_dimension_numbers<[1], [0], [0], [1], [0, 0, 1, 1], [], []>} : vector<32x56xf32>, vector<56x128xf32>, vector<32x128xf32> -> vector<32x128xf32>
    %cst_4 = arith.constant dense<0.000000e+00> : vector<128xf32>
    %14 = vector.multi_reduction <add>, %13, %cst_4 [0] : vector<32x128xf32> to vector<128xf32>
    %15 = vector.shape_cast %14 : vector<128xf32> to vector<1x128xf32>
    %cst_5 = arith.constant 3.200000e+01 : f32
    %16 = vector.broadcast %cst_5 : f32 to vector<1x128xf32>
    %17 = arith.divf %15, %16 : vector<1x128xf32>
    %18 = vector.broadcast %17 : vector<1x128xf32> to vector<32x128xf32>
    %19 = arith.subf %13, %18 : vector<32x128xf32>
    %20 = arith.mulf %19, %19 : vector<32x128xf32>
    %cst_6 = arith.constant dense<0.000000e+00> : vector<128xf32>
    %21 = vector.multi_reduction <add>, %20, %cst_6 [0] : vector<32x128xf32> to vector<128xf32>
    %22 = vector.shape_cast %21 : vector<128xf32> to vector<1x128xf32>
    %cst_7 = arith.constant 3.200000e+01 : f32
    %23 = vector.broadcast %cst_7 : f32 to vector<1x128xf32>
    %24 = arith.divf %22, %23 : vector<1x128xf32>
    %cst_8 = arith.constant 9.99999997E-7 : f32
    %25 = vector.broadcast %cst_8 : f32 to vector<1x128xf32>
    %26 = arith.addf %24, %25 : vector<1x128xf32>
    %27 = math.rsqrt %26 : vector<1x128xf32>
    %28 = vector.broadcast %27 : vector<1x128xf32> to vector<32x128xf32>
    %29 = arith.mulf %19, %28 : vector<32x128xf32>
    %c32 = arith.constant 32 : index
    %c0_9 = arith.constant 0 : index
    %30 = vector.load %arg2[%c32, %c0_9] : memref<112x128xf32, #tpu.memory_space<vmem>>, vector<32x1xf32>
    %c32_10 = arith.constant 32 : index
    %c1_11 = arith.constant 1 : index
    %31 = vector.load %arg2[%c32_10, %c1_11] : memref<112x128xf32, #tpu.memory_space<vmem>>, vector<32x1xf32>
    %32 = vector.broadcast %30 : vector<32x1xf32> to vector<32x128xf32>
    %33 = arith.mulf %29, %32 : vector<32x128xf32>
    %34 = vector.broadcast %31 : vector<32x1xf32> to vector<32x128xf32>
    %35 = arith.addf %33, %34 : vector<32x128xf32>
    %c64 = arith.constant 64 : index
    %c0_12 = arith.constant 0 : index
    %36 = vector.load %arg2[%c64, %c0_12] : memref<112x128xf32, #tpu.memory_space<vmem>>, vector<15x32xf32>
    %c64_13 = arith.constant 64 : index
    %c32_14 = arith.constant 32 : index
    %37 = vector.load %arg2[%c64_13, %c32_14] : memref<112x128xf32, #tpu.memory_space<vmem>>, vector<15x1xf32>
    %cst_15 = arith.constant dense<0.000000e+00> : vector<15x128xf32>
    %38 = tpu.matmul %36, %35, %cst_15 {dimension_numbers = #tpu.dot_dimension_numbers<[1], [0], [0], [1], [0, 0, 1, 1], [], []>} : vector<15x32xf32>, vector<32x128xf32>, vector<15x128xf32> -> vector<15x128xf32>
    %39 = vector.broadcast %37 : vector<15x1xf32> to vector<15x128xf32>
    %40 = arith.addf %38, %39 : vector<15x128xf32>
    %cst_16 = arith.constant 0.000000e+00 : f32
    %41 = vector.broadcast %cst_16 : f32 to vector<15x128xf32>
    %42 = arith.maximumf %40, %41 : vector<15x128xf32>
    %c80 = arith.constant 80 : index
    %c0_17 = arith.constant 0 : index
    %43 = vector.load %arg2[%c80, %c0_17] : memref<112x128xf32, #tpu.memory_space<vmem>>, vector<5x15xf32>
    %c80_18 = arith.constant 80 : index
    %c15 = arith.constant 15 : index
    %44 = vector.load %arg2[%c80_18, %c15] : memref<112x128xf32, #tpu.memory_space<vmem>>, vector<5x1xf32>
    %cst_19 = arith.constant dense<0.000000e+00> : vector<5x128xf32>
    %45 = tpu.matmul %43, %42, %cst_19 {dimension_numbers = #tpu.dot_dimension_numbers<[1], [0], [0], [1], [0, 0, 1, 1], [], []>} : vector<5x15xf32>, vector<15x128xf32>, vector<5x128xf32> -> vector<5x128xf32>
    %46 = vector.broadcast %44 : vector<5x1xf32> to vector<5x128xf32>
    %47 = arith.addf %45, %46 : vector<5x128xf32>
    %cst_20 = arith.constant 0.000000e+00 : f32
    %48 = vector.broadcast %cst_20 : f32 to vector<5x128xf32>
    %49 = arith.maximumf %47, %48 : vector<5x128xf32>
    %c88 = arith.constant 88 : index
    %c0_21 = arith.constant 0 : index
    %50 = vector.load %arg2[%c88, %c0_21] : memref<112x128xf32, #tpu.memory_space<vmem>>, vector<24x5xf32>
    %c88_22 = arith.constant 88 : index
    %c5 = arith.constant 5 : index
    %51 = vector.load %arg2[%c88_22, %c5] : memref<112x128xf32, #tpu.memory_space<vmem>>, vector<24x1xf32>
    %cst_23 = arith.constant dense<0.000000e+00> : vector<24x128xf32>
    %52 = tpu.matmul %50, %49, %cst_23 {dimension_numbers = #tpu.dot_dimension_numbers<[1], [0], [0], [1], [0, 0, 1, 1], [], []>} : vector<24x5xf32>, vector<5x128xf32>, vector<24x128xf32> -> vector<24x128xf32>
    %53 = vector.broadcast %51 : vector<24x1xf32> to vector<24x128xf32>
    %54 = arith.addf %52, %53 : vector<24x128xf32>
    %cst_24 = arith.constant dense<0xFF800000> : vector<128xf32>
    %55 = vector.multi_reduction <maximumf>, %54, %cst_24 [0] : vector<24x128xf32> to vector<128xf32>
    %56 = vector.shape_cast %55 : vector<128xf32> to vector<1x128xf32>
    %57 = vector.broadcast %56 : vector<1x128xf32> to vector<24x128xf32>
    %58 = arith.subf %54, %57 : vector<24x128xf32>
    %59 = math.exp %58 : vector<24x128xf32>
    %cst_25 = arith.constant dense<0.000000e+00> : vector<128xf32>
    %60 = vector.multi_reduction <add>, %59, %cst_25 [0] : vector<24x128xf32> to vector<128xf32>
    %61 = vector.shape_cast %60 : vector<128xf32> to vector<1x128xf32>
    %62 = math.log %61 : vector<1x128xf32>
    %63 = vector.broadcast %62 : vector<1x128xf32> to vector<24x128xf32>
    %64 = arith.subf %58, %63 : vector<24x128xf32>
    %c0_26 = arith.constant 0 : index
    %c0_27 = arith.constant 0 : index
    %65 = vector.load %arg3[%c0_26, %c0_27] : memref<24x128xf32, #tpu.memory_space<vmem>>, vector<24x128xf32>
    tpu.vector_store %arg3[%c0_26, %c0_27], %64 {strides = array<i32>} : memref<24x128xf32, #tpu.memory_space<vmem>>, vector<24x128xf32>,
    return
  }
  func.func @transform_0(%arg0: i32) -> (i32, i32) {
    %c0_i32 = arith.constant 0 : i32
    %c0_i32_0 = arith.constant 0 : i32
    return %c0_i32, %arg0 : i32, i32
  }
  func.func @transform_1(%arg0: i32) -> (i32, i32) {
    %c0_i32 = arith.constant 0 : i32
    %c0_i32_0 = arith.constant 0 : i32
    %c0_i32_1 = arith.constant 0 : i32
    return %c0_i32, %c0_i32_0 : i32, i32
  }
  func.func @transform_2(%arg0: i32) -> (i32, i32) {
    %c0_i32 = arith.constant 0 : i32
    %c0_i32_0 = arith.constant 0 : i32
    return %c0_i32, %arg0 : i32, i32
  }
}

</mosaic_0001>

<llo_original>
// kernel: tpu_custom_call.1
$region0: #{tpu_custom_call.1}
  #allocation0 [shape = 'u32[]', space=smem, size = 0x4, offset = 0x4, fixed_abs, tag = 'smem constant byte address 0x4 - core index']
  #allocation1 [shape = 'u32[72,128]{1,0:T(1,128)}', space=vmem, size = 0x9000, scoped, tag = 'internal scratch']
  %s0 = inlined_call_operand.hbm [shape: s32[8,256], index: 0, kind: input, shape index: {}]
  %s1 = inlined_call_operand.hbm [shape: f32[112,128], index: 1, kind: input, shape index: {}]
  %s2 = inlined_call_operand.hbm [shape: f32[24,256], index: 2, kind: output, shape index: {}]
  %s3 = sld [smem:[#allocation0]]
  $region49: #{tpu_custom_call.1} parent=0
    _
  %s5 = ssub.s32 1, %s3
  %s6 = scalar_select 0, %s5, %s3
  $region1: #{tpu_custom_call.1} parent=0
    #allocation2 [shape = 'u8[8192]{0}', space=vmem, size = 0x2000, scoped, tag = 'input window, operand 0']
    #allocation3 [shape = 's32[2]{0}', space=sflag, size = 0x8, scoped, tag = 'scoped memory for tpu_custom_call.1']
    #allocation4 [shape = 's32[2]{0}', space=sflag, size = 0x8, scoped, tag = 'scoped memory for tpu_custom_call.1']
    #allocation5 [shape = 'u8[57344]{0}', space=vmem, size = 0xe000, scoped, tag = 'input window, operand 1, single buffered']
    #allocation6 [shape = 's32[1]{0}', space=sflag, size = 0x4, scoped, tag = 'scoped memory for tpu_custom_call.1']
    #allocation7 [shape = 'u8[24576]{0}', space=vmem, size = 0x6000, scoped, tag = 'output window, operand 0']
    %7 = vsyncpa [#allocation3], 0
    %s8 = scalar_lea.sflag [#allocation3], 1
    %9 = vsyncpa %s8, 0
    %10 = vsyncpa [#allocation6], 0
    %11 = vsyncpa [#allocation4], 0
    %s12 = scalar_lea.sflag [#allocation4], 1
    %13 = vsyncpa %s12, 0
    loop: start=0, step=1, limit=4
    $region2: #{tpu_custom_call.1} parent=1 // loop_pre_header
      _
    $region3: #{tpu_custom_call.1} parent=1 // loop_header
      %s15 = sphi 0, %s19
      %p16 = scmp.ge.s32.totalorder %s15, 4
      %s25 = sphi 0, %s27
      %s28 = sphi 0, %s25
      %s29 = sphi 0, %s28
      %s45 = sphi 0, %s29
      %s49 = sphi 0, %s49
      %s51 = sphi 0, %s49
      %s52 = sphi 0, %s51
      %s66 = sphi 0, %s52
      %s72 = sphi 0, %s74
      %s75 = sphi 0, %s72
      %s76 = sphi 0, %s75
      %s92 = sphi 0, %s76
    $region4: #{tpu_custom_call.1} parent=1 // loop_header_branch
      %18 = sbr.rel (%p16) target = $region8
    $region5: #{tpu_custom_call.1} parent=1 // loop_body
      %s20 = ssub.s32 %s15, 1
      %s21 = ssub.s32 %s15, 2
      %s22 = sadd.s32 %s15, 1
      %s23 = ssub.s32 %s15, %s22
      %p24 = scmp.eq.s32.totalorder %s23, 0
      %s26 = sadd.s32 %s25, 1
      %s27 = scalar_select %p24, %s25, %s26
      %p30 = pneg %p24
      %p31 = scmp.eq.s32.totalorder %s15, 1
      %p32 = por %p30, %p31
      %p33 = scmp.ne.s32.totalorder %s25, %s28
      %p34 = scmp.eq.s32.totalorder %s15, 0
      %p35 = por %p33, %p34
      %p36 = scmp.ne.s32.totalorder %s25, %s28
      %p37 = scmp.eq.s32.totalorder %s20, 1
      %p38 = por %p36, %p37
      %p39 = scmp.ne.s32.totalorder %s28, %s29
      %p40 = scmp.eq.s32.totalorder %s20, 0
      %p41 = por %p39, %p40
      %p42 = scmp.ne.s32.totalorder %s28, %s29
      %p43 = scmp.eq.s32.totalorder %s21, 1
      %p44 = por %p42, %p43
      %p46 = scmp.ne.s32.totalorder %s29, %s45
      %p47 = scmp.eq.s32.totalorder %s21, 0
      %p48 = por %p46, %p47
      %s50 = sadd.s32 %s49, 1
      %p53 = scmp.eq.s32.totalorder %s15, 1
      %p54 = scmp.ne.s32.totalorder %s49, %s51
      %p55 = scmp.eq.s32.totalorder %s15, 0
      %p56 = por %p54, %p55
      %p57 = scmp.ne.s32.totalorder %s49, %s51
      %p58 = scmp.eq.s32.totalorder %s20, 1
      %p59 = por %p57, %p58
      %p60 = scmp.ne.s32.totalorder %s51, %s52
      %p61 = scmp.eq.s32.totalorder %s20, 0
      %p62 = por %p60, %p61
      %p63 = scmp.ne.s32.totalorder %s51, %s52
      %p64 = scmp.eq.s32.totalorder %s21, 1
      %p65 = por %p63, %p64
      %p67 = scmp.ne.s32.totalorder %s52, %s66
      %p68 = scmp.eq.s32.totalorder %s21, 0
      %p69 = por %p67, %p68
      %s70 = ssub.s32 %s15, %s22
      %p71 = scmp.eq.s32.totalorder %s70, 0
      %s73 = sadd.s32 %s72, 1
      %s74 = scalar_select %p71, %s72, %s73
      %p77 = pneg %p71
      %p78 = scmp.eq.s32.totalorder %s15, 1
      %p79 = por %p77, %p78
      %p80 = scmp.ne.s32.totalorder %s72, %s75
      %p81 = scmp.eq.s32.totalorder %s15, 0
      %p82 = por %p80, %p81
      %p83 = scmp.ne.s32.totalorder %s72, %s75
      %p84 = scmp.eq.s32.totalorder %s20, 1
      %p85 = por %p83, %p84
      %p86 = scmp.ne.s32.totalorder %s75, %s76
      %p87 = scmp.eq.s32.totalorder %s20, 0
      %p88 = por %p86, %p87
      %p89 = scmp.ne.s32.totalorder %s75, %s76
      %p90 = scmp.eq.s32.totalorder %s21, 1
      %p91 = por %p89, %p90
      %p93 = scmp.ne.s32.totalorder %s76, %s92
      %p94 = scmp.eq.s32.totalorder %s21, 0
      %p95 = por %p93, %p94
      %p96 = scmp.le.s32.totalorder 1, %s15
      %p97 = scmp.lt.s32.totalorder %s15, 3
      %p98 = pnand %p96, %p97
      %p99 = pneg %p98
      // Predicated region
      $region9: #{tpu_custom_call.1} parent=5 // pred_check
        _
      $region10: #{tpu_custom_call.1} parent=5 // pred_check_branch
        %101 = sbr.rel (%p98) target = $region12
      $region11: #{tpu_custom_call.1} parent=5 // pred_region
        %s102 = ssub.s32 %s15, 1
        // Predicated region
        $region13: #{tpu_custom_call.1} parent=11 // pred_check
          %p103 = pneg %p62
        $region14: #{tpu_custom_call.1} parent=11 // pred_check_branch
          %105 = sbr.rel (%p103) target = $region16
        $region15: #{tpu_custom_call.1} parent=11 // pred_region
          %107 = vsyncadd [#allocation6], 0
          %s108 = sshll.u32 %s1, 4
          %s109 = int_to_ptr.hbm [resolvable:$true] %s108
          %s110 = sshll.u32 [#allocation5], 4
          %s111 = int_to_ptr.vmem [resolvable:$true] %s110
          %116 = dma.hbm_to_vmem [thread:$0]  %s109, 1792, %s111, [#allocation6], 128, 128, 8
        $region16: #{tpu_custom_call.1} parent=11 // pred_fallthru
          _
      $region12: #{tpu_custom_call.1} parent=5 // pred_fallthru
        _
      %p117 = scmp.lt.s32.totalorder %s15, 2
      // Predicated region
      $region17: #{tpu_custom_call.1} parent=5 // pred_check
        %p118 = pneg %p117
      $region18: #{tpu_custom_call.1} parent=5 // pred_check_branch
        %120 = sbr.rel (%p118) target = $region20
      $region19: #{tpu_custom_call.1} parent=5 // pred_region
        // Predicated region
        $region21: #{tpu_custom_call.1} parent=19 // pred_check
          %p121 = pneg %p35
        $region22: #{tpu_custom_call.1} parent=19 // pred_check_branch
          %123 = sbr.rel (%p121) target = $region24
        $region23: #{tpu_custom_call.1} parent=19 // pred_region
          %s124 = sand.u32 %s25, 1
          %s125 = scalar_lea.sflag [#allocation3], %s124
          %s126 = sand.u32 %s25, 1
          %s127 = smul.addr %s126, 8
          %s128 = scalar_lea.vmem [#allocation2], %s127
          %130 = vsyncadd %s125, 0
          %s131 = smul.addr %s15, 8
          %s132 = scalar_lea.hbm %s0, %s131
          %s134 = sshll.u32 %s132, 4
          %s135 = int_to_ptr.hbm [resolvable:$true] %s134
          %s136 = sshll.u32 %s128, 4
          %s137 = int_to_ptr.vmem [resolvable:$true] %s136
          %139 = dma.hbm_to_vmem [thread:$0]  %s135, 128, %s137, %s125
        $region24: #{tpu_custom_call.1} parent=19 // pred_fallthru
          _
      $region20: #{tpu_custom_call.1} parent=5 // pred_fallthru
        _
      %p140 = scmp.le.s32.totalorder 1, %s15
      %p141 = scmp.lt.s32.totalorder %s15, 3
      %p142 = pnand %p140, %p141
      %p143 = pneg %p142
      // Predicated region
      $region25: #{tpu_custom_call.1} parent=5 // pred_check
        _
      $region26: #{tpu_custom_call.1} parent=5 // pred_check_branch
        %145 = sbr.rel (%p142) target = $region28
      $region27: #{tpu_custom_call.1} parent=5 // pred_region
        %s146 = ssub.s32 %s15, 1
        %s147 = sand.u32 %s28, 1
        %s148 = scalar_lea.sflag [#allocation3], %s147
        %s149 = sand.u32 %s28, 1
        %s150 = smul.addr %s149, 8
        %s151 = scalar_lea.vmem [#allocation2], %s150
        // Predicated region
        $region29: #{tpu_custom_call.1} parent=27 // pred_check
          %p152 = pneg %p41
        $region30: #{tpu_custom_call.1} parent=27 // pred_check_branch
          %154 = sbr.rel (%p152) target = $region32
        $region31: #{tpu_custom_call.1} parent=27 // pred_region
          %156 = dma.done %s148, 128
        $region32: #{tpu_custom_call.1} parent=27 // pred_fallthru
          _
        // Predicated region
        $region33: #{tpu_custom_call.1} parent=27 // pred_check
          %p157 = pneg %p62
        $region34: #{tpu_custom_call.1} parent=27 // pred_check_branch
          %159 = sbr.rel (%p157) target = $region36
        $region35: #{tpu_custom_call.1} parent=27 // pred_region
          %161 = dma.done [#allocation6], 1792
        $region36: #{tpu_custom_call.1} parent=27 // pred_fallthru
          _
        %s162 = sand.u32 %s28, 1
        %s163 = scalar_lea.sflag [#allocation3], %s162
        %s164 = sand.u32 %s28, 1
        %s165 = smul.addr %s164, 8
        %s166 = scalar_lea.vmem [#allocation2], %s165
        %p167 = pneg %p41
        %p168 = pneg %p38
        %p169 = pneg %p62
        %p170 = pneg %p59
        %p171 = pneg %p88
        %p172 = pneg %p85
        %s173 = sand.u32 %s75, 1
        %s174 = scalar_lea.sflag [#allocation4], %s173
        %s175 = sand.u32 %s75, 1
        %s176 = smul.addr %s175, 24
        %s177 = scalar_lea.vmem [#allocation7], %s176
        %v178 = vld [vmem:[%s151] sm:$0x1]
        %v179 = vld [vmem:[%s151 + $0x1] sm:$0x1]
        %v180 = vld [vmem:[#allocation5] sm:$0xff]
        %v181 = vld [vmem:[#allocation5 + $0x8] sm:$0xff]
        %v182 = vld [vmem:[#allocation5 + $0x10] sm:$0xff]
        %v183 = vld [vmem:[#allocation5 + $0x18] sm:$0xff]
        %v184 = vlaneseq
        %v185 = vshrl.u32 %v184, 7
        %v186 = vadd.s32 %v185, 8
        %v187 = vadd.s32 %v185, 16
        %v188 = vadd.s32 %v185, 24
        %v189 = vadd.s32 %v185, 32
        %v190 = vadd.s32 %v185, 40
        %v191 = vadd.s32 %v185, 48
        %v192 = vperm.slane %v179, 0
        %vm193 = vcmp.eq.s32.totalorder %v185, %v192
        %vm194 = vcmp.eq.s32.totalorder %v186, %v192
        %vm195 = vcmp.eq.s32.totalorder %v187, %v192
        %vm196 = vcmp.eq.s32.totalorder %v188, %v192
        %vm197 = vcmp.eq.s32.totalorder %v189, %v192
        %vm198 = vcmp.eq.s32.totalorder %v190, %v192
        %vm199 = vcmp.eq.s32.totalorder %v191, %v192
        %v200 = vadd.s32 %v178, 24
        %v201 = vperm.slane %v200, 0
        %vm202 = vcmp.eq.s32.totalorder %v185, %v201
        %vm203 = vcmp.eq.s32.totalorder %v186, %v201
        %vm204 = vcmp.eq.s32.totalorder %v187, %v201
        %vm205 = vcmp.eq.s32.totalorder %v188, %v201
        %vm206 = vcmp.eq.s32.totalorder %v189, %v201
        %vm207 = vcmp.eq.s32.totalorder %v190, %v201
        %vm208 = vcmp.eq.s32.totalorder %v191, %v201
        %vm209 = vmor %vm193, %vm202
        %vm210 = vmor %vm194, %vm203
        %vm211 = vmor %vm195, %vm204
        %vm212 = vmor %vm196, %vm205
        %vm213 = vmor %vm197, %vm206
        %vm214 = vmor %vm198, %vm207
        %vm215 = vmor %vm199, %vm208
        %v216 = vsel %vm209, 1, 0
        %v217 = vsel %vm210, 1, 0
        %v218 = vsel %vm211, 1, 0
        %v219 = vsel %vm212, 1, 0
        %v220 = vsel %vm213, 1, 0
        %v221 = vsel %vm214, 1, 0
        %v222 = vsel %vm215, 1, 0
        %v223 = vcvt.s32.f32 %v216
        %v224 = vcvt.s32.f32 %v217
        %v225 = vcvt.s32.f32 %v218
        %v226 = vcvt.s32.f32 %v219
        %v227 = vcvt.s32.f32 %v220
        %v228 = vcvt.s32.f32 %v221
        %v229 = vcvt.s32.f32 %v222
        %vm230 = vcmask 457728
        %v232 = vsel %vm230, %v180, 0
        %v235 = vsel %vm230, %v181, 0
        %v238 = vsel %vm230, %v182, 0
        %v241 = vsel %vm230, %v183, 0
        %243 = vmatpush.msra.mxu0 0.0
        %244 = vmatpush.msra.mxu0 0.0
        %245 = vmatpush.msra.mxu0 0.0
        %246 = vmatpush.msra.mxu0 0.0
        %247 = vmatpush.msra.mxu0 0.0
        %248 = vmatpush.msra.mxu0 0.0
        %249 = vmatpush.msra.mxu0 0.0
        %250 = vmatpush.msra.mxu0 0.0
        %251 = vmatpush.msra.mxu0 0.0
        %252 = vmatpush.msra.mxu0 %v229
        %253 = vmatpush.msra.mxu0 %v228
        %254 = vmatpush.msra.mxu0 %v227
        %255 = vmatpush.msra.mxu0 %v226
        %256 = vmatpush.msra.mxu0 %v225
        %257 = vmatpush.msra.mxu0 %v224
        %258 = vmatpush.msra.mxu0 %v223
        %259 = vmatmul.f32.gmra.mxu0 %v232
        %v260 = vpop.f32.mrf.mxu0
        %v261 = vadd.f32 0.0, %v260
        %262 = vmatmul.f32.gmra.mxu0 %v235
        %v263 = vpop.f32.mrf.mxu0
        %v264 = vadd.f32 0.0, %v263
        %265 = vmatmul.f32.gmra.mxu0 %v238
        %v266 = vpop.f32.mrf.mxu0
        %v267 = vadd.f32 0.0, %v266
        %268 = vmatmul.f32.gmra.mxu0 %v241
        %v269 = vpop.f32.mrf.mxu0
        %v270 = vadd.f32 0.0, %v269
        %271 = vdwg.mxu0
        %v272 = vadd.f32 %v261, %v264
        %v273 = vadd.f32 %v272, %v267
        %v274 = vadd.f32 %v273, %v270
        %v275 = vrot.slane %v274, 4
        %v276 = vadd.f32 %v274, %v275
        %v277 = vrot.slane %v276, 2
        %v278 = vadd.f32 %v276, %v277
        %v279 = vrot.slane %v278, 1
        %v280 = vadd.f32 %v278, %v279
        %v281 = vrcp.pop 32.0
        %v282 = vmul.f32 32.0, %v281
        %v283 = vsub.f32 1.0, %v282
        %v284 = vmul.f32 %v281, %v283
        %v285 = vadd.f32 %v281, %v284
        %vm286 = vweird.f32 %v281
        %v287 = vsel %vm286, %v281, %v285
        %v288 = vmul.f32 %v280, %v287
        %v289 = vsub.f32 %v261, %v288
        %v290 = vsub.f32 %v264, %v288
        %v291 = vsub.f32 %v267, %v288
        %v292 = vsub.f32 %v270, %v288
        %v293 = vmul.f32 %v289, %v289
        %v294 = vmul.f32 %v290, %v290
        %v295 = vmul.f32 %v291, %v291
        %v296 = vmul.f32 %v292, %v292
        %v297 = vadd.f32 %v293, %v294
        %v298 = vadd.f32 %v297, %v295
        %v299 = vadd.f32 %v298, %v296
        %v300 = vrot.slane %v299, 4
        %v301 = vadd.f32 %v299, %v300
        %v302 = vrot.slane %v301, 2
        %v303 = vadd.f32 %v301, %v302
        %v304 = vrot.slane %v303, 1
        %v305 = vadd.f32 %v303, %v304
        %v306 = vmul.f32 %v305, %v287
        %v307 = vadd.f32 %v306, 1e-06
        %v308 = vrsqrt.pop %v307
        %v309 = vmul.f32 %v308, %v307
        %v310 = vmul.f32 %v309, %v308
        %v311 = vmul.f32 0.5, %v310
        %v312 = vsub.f32 1.5, %v311
        %v313 = vmul.f32 %v308, %v312
        %vm314 = vweird.f32 %v307
        %vm315 = vweird.f32 %v308
        %vm316 = vmor %vm314, %vm315
        %v317 = vsel %vm316, %v308, %v313
        %v318 = vmul.f32 %v289, %v317
        %v319 = vmul.f32 %v290, %v317
        %v320 = vmul.f32 %v291, %v317
        %v321 = vmul.f32 %v292, %v317
        %v322 = vld [vmem:[#allocation5 + $0x20] sm:$0xff]
        %v323 = vld [vmem:[#allocation5 + $0x28] sm:$0xff]
        %v324 = vld [vmem:[#allocation5 + $0x30] sm:$0xff]
        %v325 = vld [vmem:[#allocation5 + $0x38] sm:$0xff]
        %327 = vset.pattern.permute.xlu0 0
        %328 = vperm.xlu0 %327, %v322
        %v329 = vpop.permute.xlu0 %328
        %332 = vset.pattern.permute.xlu0 0
        %333 = vperm.xlu0 %332, %v323
        %v334 = vpop.permute.xlu0 %333
        %337 = vset.pattern.permute.xlu0 0
        %338 = vperm.xlu0 %337, %v324
        %v339 = vpop.permute.xlu0 %338
        %342 = vset.pattern.permute.xlu0 0
        %343 = vperm.xlu0 %342, %v325
        %v344 = vpop.permute.xlu0 %343
        %v346 = vmul.f32 %v318, %v329
        %v347 = vmul.f32 %v319, %v334
        %v348 = vmul.f32 %v320, %v339
        %v349 = vmul.f32 %v321, %v344
        %350 = vset.pattern.permute.xlu0 1
        %351 = vperm.xlu0 %350, %v322
        %v352 = vpop.permute.xlu0 %351
        %354 = vset.pattern.permute.xlu0 1
        %355 = vperm.xlu0 %354, %v323
        %v356 = vpop.permute.xlu0 %355
        %358 = vset.pattern.permute.xlu0 1
        %359 = vperm.xlu0 %358, %v324
        %v360 = vpop.permute.xlu0 %359
        %362 = vset.pattern.permute.xlu0 1
        %363 = vperm.xlu0 %362, %v325
        %v364 = vpop.permute.xlu0 %363
        %v366 = vadd.f32 %v346, %v352
        %v367 = vadd.f32 %v347, %v356
        %v368 = vadd.f32 %v348, %v360
        %v369 = vadd.f32 %v349, %v364
        %v370 = vld [vmem:[#allocation5 + $0x40] sm:$0xff]
        %v371 = vld [vmem:[#allocation5 + $0x48] sm:$0x7f]
        %373 = vset.pattern.permute.xlu0 32
        %374 = vperm.xlu0 %373, %v370
        %v375 = vpop.permute.xlu0 %374
        %378 = vset.pattern.permute.xlu0 32
        %379 = vperm.xlu0 %378, %v371
        %v380 = vpop.permute.xlu0 %379
        %vm382 = vcmask 261120
        %v383 = vsel %vm382, %v370, 0
        %v385 = vsel %vm382, %v371, 0
        %387 = vmatpush.msra.mxu0 0.0
        %388 = vmatpush.msra.mxu0 0.0
        %389 = vmatpush.msra.mxu0 0.0
        %390 = vmatpush.msra.mxu0 0.0
        %391 = vmatpush.msra.mxu0 0.0
        %392 = vmatpush.msra.mxu0 0.0
        %393 = vmatpush.msra.mxu0 0.0
        %394 = vmatpush.msra.mxu0 0.0
        %395 = vmatpush.msra.mxu0 0.0
        %396 = vmatpush.msra.mxu0 0.0
        %397 = vmatpush.msra.mxu0 0.0
        %398 = vmatpush.msra.mxu0 0.0
        %399 = vmatpush.msra.mxu0 %v369
        %400 = vmatpush.msra.mxu0 %v368
        %401 = vmatpush.msra.mxu0 %v367
        %402 = vmatpush.msra.mxu0 %v366
        %403 = vmatmul.f32.gmra.mxu0 %v383
        %v404 = vpop.f32.mrf.mxu0
        %v405 = vadd.f32 %v375, %v404
        %406 = vmatmul.f32.gmra.mxu0 %v385
        %v407 = vpop.f32.mrf.mxu0
        %v408 = vadd.f32 %v380, %v407
        %409 = vdwg.mxu0
        %v410 = vmax.f32 %v405, 0.0
        %v411 = vmax.f32 %v408, 0.0
        %v412 = vld [vmem:[#allocation5 + $0x50] sm:$0x1f]
        %414 = vset.pattern.permute.xlu0 15
        %415 = vperm.xlu0 %414, %v412
        %v416 = vpop.permute.xlu0 %415
        %vm418 = vcmask 121856
        %v419 = vsel %vm418, %v412, 0
        %vm421 = vcmask 1046528
        %v423 = vsel %vm421, %v411, 0
        %425 = vmatpush.msra.mxu0 0.0
        %426 = vmatpush.msra.mxu0 0.0
        %427 = vmatpush.msra.mxu0 0.0
        %428 = vmatpush.msra.mxu0 0.0
        %429 = vmatpush.msra.mxu0 0.0
        %430 = vmatpush.msra.mxu0 0.0
        %431 = vmatpush.msra.mxu0 0.0
        %432 = vmatpush.msra.mxu0 0.0
        %433 = vmatpush.msra.mxu0 0.0
        %434 = vmatpush.msra.mxu0 0.0
        %435 = vmatpush.msra.mxu0 0.0
        %436 = vmatpush.msra.mxu0 0.0
        %437 = vmatpush.msra.mxu0 0.0
        %438 = vmatpush.msra.mxu0 0.0
        %439 = vmatpush.msra.mxu0 %v423
        %440 = vmatpush.msra.mxu0 %v410
        %441 = vmatmul.f32.gmra.mxu0 %v419
        %v442 = vpop.f32.mrf.mxu0
        %v443 = vadd.f32 %v416, %v442
        %444 = vdwg.mxu0
        %v445 = vmax.f32 %v443, 0.0
        %v446 = vld [vmem:[#allocation5 + $0x58] sm:$0xff]
        %v447 = vld [vmem:[#allocation5 + $0x60] sm:$0xff]
        %v448 = vld [vmem:[#allocation5 + $0x68] sm:$0xff]
        %450 = vset.pattern.permute.xlu0 5
        %451 = vperm.xlu0 %450, %v446
        %v452 = vpop.permute.xlu0 %451
        %455 = vset.pattern.permute.xlu0 5
        %456 = vperm.xlu0 %455, %v447
        %v457 = vpop.permute.xlu0 %456
        %460 = vset.pattern.permute.xlu0 5
        %461 = vperm.xlu0 %460, %v448
        %v462 = vpop.permute.xlu0 %461
        %vm464 = vcmask 39936
        %v465 = vsel %vm464, %v446, 0
        %v467 = vsel %vm464, %v447, 0
        %v469 = vsel %vm464, %v448, 0
        %vm471 = vcmask 1044480
        %v473 = vsel %vm471, %v445, 0
        %475 = vmatpush.msra.mxu0 0.0
        %476 = vmatpush.msra.mxu0 0.0
        %477 = vmatpush.msra.mxu0 0.0
        %478 = vmatpush.msra.mxu0 0.0
        %479 = vmatpush.msra.mxu0 0.0
        %480 = vmatpush.msra.mxu0 0.0
        %481 = vmatpush.msra.mxu0 0.0
        %482 = vmatpush.msra.mxu0 0.0
        %483 = vmatpush.msra.mxu0 0.0
        %484 = vmatpush.msra.mxu0 0.0
        %485 = vmatpush.msra.mxu0 0.0
        %486 = vmatpush.msra.mxu0 0.0
        %487 = vmatpush.msra.mxu0 0.0
        %488 = vmatpush.msra.mxu0 0.0
        %489 = vmatpush.msra.mxu0 0.0
        %490 = vmatpush.msra.mxu0 %v473
        %491 = vmatmul.f32.gmra.mxu0 %v465
        %v492 = vpop.f32.mrf.mxu0
        %v493 = vadd.f32 %v452, %v492
        %494 = vmatmul.f32.gmra.mxu0 %v467
        %v495 = vpop.f32.mrf.mxu0
        %v496 = vadd.f32 %v457, %v495
        %497 = vmatmul.f32.gmra.mxu0 %v469
        %v498 = vpop.f32.mrf.mxu0
        %v499 = vadd.f32 %v462, %v498
        %500 = vdwg.mxu0
        %v501 = vmax.f32 %v493, %v496
        %v502 = vmax.f32 %v501, %v499
        %v503 = vrot.slane %v502, 4
        %v504 = vmax.f32 %v502, %v503
        %v505 = vrot.slane %v504, 2
        %v506 = vmax.f32 %v504, %v505
        %v507 = vrot.slane %v506, 1
        %v508 = vmax.f32 %v506, %v507
        %v509 = vsub.f32 %v493, %v508
        %v510 = vsub.f32 %v496, %v508
        %v511 = vsub.f32 %v499, %v508
        %v512 = vmul.f32 %v509, 1.442695
        %v513 = vpow.pop %v512
        %v514 = vmul.f32 %v510, 1.442695
        %v515 = vpow.pop %v514
        %v516 = vmul.f32 %v511, 1.442695
        %v517 = vpow.pop %v516
        %v518 = vadd.f32 %v513, %v515
        %v519 = vadd.f32 %v518, %v517
        %v520 = vrot.slane %v519, 4
        %v521 = vadd.f32 %v519, %v520
        %v522 = vrot.slane %v521, 2
        %v523 = vadd.f32 %v521, %v522
        %v524 = vrot.slane %v523, 1
        %v525 = vadd.f32 %v523, %v524
        %v526 = vlog2.pop %v525
        %v527 = vmul.f32 %v526, 0.6931472
        %v528 = vsub.f32 %v509, %v527
        %v529 = vsub.f32 %v510, %v527
        %v530 = vsub.f32 %v511, %v527
        %531 = vst [vmem:[%s177] sm:$0xff] %v528
        %532 = vst [vmem:[%s177 + $0x8] sm:$0xff] %v529
        %533 = vst [vmem:[%s177 + $0x10] sm:$0xff] %v530
        %s534 = sand.u32 %s75, 1
        %s535 = scalar_lea.sflag [#allocation4], %s534
        %s536 = sand.u32 %s75, 1
        %s537 = smul.addr %s536, 24
        %s538 = scalar_lea.vmem [#allocation7], %s537
        // Predicated region
        $region37: #{tpu_custom_call.1} parent=27 // pred_check
          %p539 = pneg %p85
        $region38: #{tpu_custom_call.1} parent=27 // pred_check_branch
          %541 = sbr.rel (%p539) target = $region40
        $region39: #{tpu_custom_call.1} parent=27 // pred_region
          %543 = vsyncadd %s535, 0
          %s544 = smul.addr %s20, 8
          %s545 = scalar_lea.hbm %s2, %s544
          %s546 = sshll.u32 %s538, 4
          %s547 = int_to_ptr.vmem [resolvable:$true] %s546
          %s548 = sshll.u32 %s545, 4
          %s549 = int_to_ptr.hbm [resolvable:$true] %s548
          %554 = dma.vmem_to_hbm [thread:$0]  %s547, 384, %s549, %s535, 128, 256, 8
        $region40: #{tpu_custom_call.1} parent=27 // pred_fallthru
          _
      $region28: #{tpu_custom_call.1} parent=5 // pred_fallthru
        _
      %p555 = scmp.le.s32.totalorder 2, %s15
      // Predicated region
      $region41: #{tpu_custom_call.1} parent=5 // pred_check
        %p556 = pneg %p555
      $region42: #{tpu_custom_call.1} parent=5 // pred_check_branch
        %558 = sbr.rel (%p556) target = $region44
      $region43: #{tpu_custom_call.1} parent=5 // pred_region
        %s559 = ssub.s32 %s15, 2
        // Predicated region
        $region45: #{tpu_custom_call.1} parent=43 // pred_check
          %p560 = pneg %p91
        $region46: #{tpu_custom_call.1} parent=43 // pred_check_branch
          %562 = sbr.rel (%p560) target = $region48
        $region47: #{tpu_custom_call.1} parent=43 // pred_region
          %s563 = sand.u32 %s76, 1
          %s564 = scalar_lea.sflag [#allocation4], %s563
          %s565 = sand.u32 %s76, 1
          %s566 = smul.addr %s565, 24
          %s567 = scalar_lea.vmem [#allocation7], %s566
          %569 = dma.done %s564, 384
        $region48: #{tpu_custom_call.1} parent=43 // pred_fallthru
          _
      $region44: #{tpu_custom_call.1} parent=5 // pred_fallthru
        _
    $region6: #{tpu_custom_call.1} parent=1 // loop_footer
      %s19 = sadd.s32 1, %s15
    $region7: #{tpu_custom_call.1} parent=1 // loop_footer_branch
      %14 = sbr.rel target = $region3
    $region8: #{tpu_custom_call.1} parent=1 // loop_exit
      _
    %570 = vsyncpa [#allocation3], 1
    %s571 = scalar_lea.sflag [#allocation3], 1
    %572 = vsyncpa %s571, 1
    %573 = vsyncpa [#allocation6], 1
    %574 = vsyncpa [#allocation4], 1
    %s575 = scalar_lea.sflag [#allocation4], 1
    %576 = vsyncpa %s575, 1

</llo_original>
